<compile_context>
chip_gen: v7x
topology: tpu7x:2x2x1
jax: 0.10.0
libtpu: 0.0.40
codegen_flags: <defaults>
</compile_context>

<pallas_src>
import functools

import jax
import jax.numpy as jnp
from jax.experimental import pallas as pl
from jax.experimental.pallas import tpu as pltpu


def _ce_loss_kernel(logits_ref, targets_ref, partial_ref, *, n_rows, tile_n, needs_mask):
    i = pl.program_id(0)

    raw = logits_ref[...]                                   # (TILE_N, C) input dtype
    logits = raw.astype(jnp.float32)                        # upcast in VMEM
    tgt = targets_ref[...]                                  # (TILE_N, 1) int32

    # Numerically stable shifted log-sum-exp per row.
    row_max = jnp.max(logits, axis=-1, keepdims=True)       # (TILE_N, 1)
    sum_exp = jnp.sum(jnp.exp(logits - row_max), axis=-1, keepdims=True)

    # Target gather: select in the input dtype (cheap), accumulate the single hit in f32.
    col = jax.lax.broadcasted_iota(jnp.int32, raw.shape, 1)
    tgt_logit = jnp.sum(
        jnp.where(col == tgt, raw, jnp.zeros_like(raw)).astype(jnp.float32),
        axis=-1, keepdims=True)                             # (TILE_N, 1)

    per_row = jnp.log(sum_exp) + row_max - tgt_logit        # (TILE_N, 1) per-row NLL

    if needs_mask:
        # Rows of the (ragged) last block that lie past the real batch contribute 0.
        row_ids = i * tile_n + jax.lax.broadcasted_iota(jnp.int32, per_row.shape, 0)
        per_row = jnp.where(row_ids < n_rows, per_row, 0.0)

    psum = jnp.sum(per_row, axis=0, keepdims=True)          # (1, 1)
    partial_ref[...] = jnp.broadcast_to(psum.reshape(1, 1, 1), partial_ref.shape)


def _choose_tile_n(n, c, itemsize):
    """Row tile targeting ~2 MiB of raw logits, rounded to the dtype-native sublane pack."""
    sublane = max(8, 32 // itemsize)          # 8 rows f32, 16 rows bf16, 32 rows int8
    c_pad = ((c + 127) // 128) * 128          # lane padding
    target_bytes = 2 * 1024 * 1024
    rows = target_bytes // max(1, c_pad * itemsize)
    rows = max(sublane, (int(rows) // sublane) * sublane)
    if rows >= n:
        return n                              # single block spanning the full batch
    return rows


def custom_classification_loss(outputs, targets, *, tile_n=None):
    """Equivalent of CustomClassificationLoss.forward(outputs, targets).

    outputs: float array [N, C] (logits, any float dtype; streamed in native dtype)
    targets: int array [N] (class indices)
    returns: scalar float32 mean cross-entropy loss
    """
    n, c = outputs.shape
    itemsize = jnp.dtype(outputs.dtype).itemsize
    if tile_n is None:
        tile_n = _choose_tile_n(n, c, itemsize)
    grid = pl.cdiv(n, tile_n)
    needs_mask = (n % tile_n) != 0            # ragged last block handled in-kernel, no pad

    tgt = targets.astype(jnp.int32).reshape(n, 1)

    # Explicit VMEM budget: 2x double-buffered input tile + f32 in-kernel temporaries
    # (lane-padded C), kept below v7x's 64 MiB physical VMEM.
    c_pad = ((c + 127) // 128) * 128
    in_tile = tile_n * c_pad * itemsize
    f32_tile = tile_n * c_pad * 4
    vmem_limit = int(min(max(2 * in_tile + 6 * f32_tile + (2 << 20), 8 << 20), 48 << 20))

    kernel = functools.partial(
        _ce_loss_kernel, n_rows=n, tile_n=tile_n, needs_mask=needs_mask)

    cost = pl.CostEstimate(
        flops=4 * n * c,
        transcendentals=n * c,                               # exp per element
        bytes_accessed=n * c * itemsize + n * 4 + grid * 8 * 128 * 4,
    )

    partials = pl.pallas_call(
        kernel,
        out_shape=jax.ShapeDtypeStruct((grid, 8, 128), jnp.float32),
        grid=(grid,),
        in_specs=[
            pl.BlockSpec((tile_n, c), lambda i: (i, 0)),     # logits tile (native dtype)
            pl.BlockSpec((tile_n, 1), lambda i: (i, 0)),     # targets tile (int32)
        ],
        out_specs=pl.BlockSpec((1, 8, 128), lambda i: (i, 0, 0)),  # per-tile partial sum
        compiler_params=pltpu.CompilerParams(
            dimension_semantics=("parallel",),               # tiles independent -> megacore
            vmem_limit_bytes=vmem_limit,
        ),
        cost_estimate=cost,
    )(outputs, tgt)

    return jnp.sum(partials[:, 0, 0]) / jnp.float32(n)


def _reference_loss(outputs, targets):
    logits = outputs.astype(jnp.float32)
    lse = jax.nn.logsumexp(logits, axis=-1)
    tgt_logit = jnp.take_along_axis(
        logits, targets[:, None].astype(jnp.int32), axis=-1)[:, 0]
    return jnp.mean(lse - tgt_logit)


if __name__ == "__main__":
    key = jax.random.PRNGKey(0)
    k1, k2, k3, k4, k5, k6 = jax.random.split(key, 6)

    # Case 1: f32 logits, batch equals one sublane-aligned block.
    N1, C1 = 8, 32
    out1 = jax.random.normal(k1, (N1, C1), dtype=jnp.float32)
    tgt1 = jax.random.randint(k2, (N1,), 0, C1, dtype=jnp.int32)
    loss1 = custom_classification_loss(out1, tgt1)
    jax.block_until_ready(loss1)
    ref1 = _reference_loss(out1, tgt1)
    assert jnp.allclose(loss1, ref1, atol=1e-5, rtol=1e-5), (loss1, ref1)

    # Case 2: bf16 logits streamed natively, N not sublane-aligned, single full-array block.
    N2, C2 = 20, 100
    out2 = jax.random.normal(k3, (N2, C2), dtype=jnp.bfloat16)
    tgt2 = jax.random.randint(k4, (N2,), 0, C2, dtype=jnp.int32)
    loss2 = custom_classification_loss(out2, tgt2)
    jax.block_until_ready(loss2)
    ref2 = _reference_loss(out2, tgt2)
    assert jnp.allclose(loss2, ref2, atol=1e-4, rtol=1e-4), (loss2, ref2)

    # Case 3: forced small tile -> multi-tile grid with a ragged, masked last block (no pad).
    N3, C3 = 20, 32
    out3 = jax.random.normal(k5, (N3, C3), dtype=jnp.float32)
    tgt3 = jax.random.randint(k6, (N3,), 0, C3, dtype=jnp.int32)
    loss3 = custom_classification_loss(out3, tgt3, tile_n=8)
    jax.block_until_ready(loss3)
    ref3 = _reference_loss(out3, tgt3)
    assert jnp.allclose(loss3, ref3, atol=1e-5, rtol=1e-5), (loss3, ref3)

    print("KERNEL_OK")
</pallas_src>

<mosaic_0001>
module attributes {stable_mosaic.version = 11 : i64} {
  func.func @_ce_loss_kernel(%arg0: i32, %arg1: memref<8x32xf32, #tpu.memory_space<vmem>>, %arg2: memref<8x1xi32, #tpu.memory_space<vmem>>, %arg3: memref<1x8x128xf32, #tpu.memory_space<vmem>>) attributes {dimension_semantics = [#tpu.dimension_semantics<parallel>], iteration_bounds = array<i64: 1>, scalar_prefetch = 0 : i64, scratch_operands = 0 : i64, tpu.core_type = #tpu.core_type<tc>, window_params = [{transform_indices = @transform_0, window_bounds = array<i64: 8, 32>}, {transform_indices = @transform_1, window_bounds = array<i64: 8, 1>}, {transform_indices = @transform_2, window_bounds = array<i64: 1, 8, 128>}]} {
    %c0 = arith.constant 0 : index
    %c0_0 = arith.constant 0 : index
    %0 = vector.load %arg1[%c0, %c0_0] : memref<8x32xf32, #tpu.memory_space<vmem>>, vector<8x32xf32>
    %c0_1 = arith.constant 0 : index
    %c0_2 = arith.constant 0 : index
    %1 = vector.load %arg2[%c0_1, %c0_2] : memref<8x1xi32, #tpu.memory_space<vmem>>, vector<8x1xi32>
    %cst = arith.constant dense<0xFF800000> : vector<8xf32>
    %2 = vector.multi_reduction <maximumf>, %0, %cst [1] : vector<8x32xf32> to vector<8xf32>
    %3 = vector.shape_cast %2 : vector<8xf32> to vector<8x1xf32>
    %4 = vector.broadcast %3 : vector<8x1xf32> to vector<8x32xf32>
    %5 = arith.subf %0, %4 : vector<8x32xf32>
    %6 = math.exp %5 : vector<8x32xf32>
    %cst_3 = arith.constant dense<0.000000e+00> : vector<8xf32>
    %7 = vector.multi_reduction <add>, %6, %cst_3 [1] : vector<8x32xf32> to vector<8xf32>
    %8 = vector.shape_cast %7 : vector<8xf32> to vector<8x1xf32>
    %9 = tpu.iota {dimensions = array<i32: 1>} : vector<8x32xi32>
    %10 = vector.broadcast %1 : vector<8x1xi32> to vector<8x32xi32>
    %11 = arith.cmpi eq, %9, %10 : vector<8x32xi32>
    %cst_4 = arith.constant 0.000000e+00 : f32
    %12 = vector.broadcast %cst_4 : f32 to vector<8x32xf32>
    %13 = arith.select %11, %0, %12 : vector<8x32xi1>, vector<8x32xf32>
    %cst_5 = arith.constant dense<0.000000e+00> : vector<8xf32>
    %14 = vector.multi_reduction <add>, %13, %cst_5 [1] : vector<8x32xf32> to vector<8xf32>
    %15 = vector.shape_cast %14 : vector<8xf32> to vector<8x1xf32>
    %16 = math.log %8 : vector<8x1xf32>
    %17 = arith.addf %16, %3 : vector<8x1xf32>
    %18 = arith.subf %17, %15 : vector<8x1xf32>
    %cst_6 = arith.constant dense<0.000000e+00> : vector<1xf32>
    %19 = vector.multi_reduction <add>, %18, %cst_6 [0] : vector<8x1xf32> to vector<1xf32>
    %20 = vector.shape_cast %19 : vector<1xf32> to vector<1x1xf32>
    %21 = vector.shape_cast %20 : vector<1x1xf32> to vector<1x1x1xf32>
    %22 = vector.shape_cast %21 : vector<1x1x1xf32> to vector<1x1x1xf32>
    %23 = vector.broadcast %22 : vector<1x1x1xf32> to vector<1x8x128xf32>
    %c0_7 = arith.constant 0 : index
    %c0_8 = arith.constant 0 : index
    %c0_9 = arith.constant 0 : index
    %24 = vector.load %arg3[%c0_7, %c0_8, %c0_9] : memref<1x8x128xf32, #tpu.memory_space<vmem>>, vector<1x8x128xf32>
    tpu.vector_store %arg3[%c0_7, %c0_8, %c0_9], %23 {strides = array<i32>} : memref<1x8x128xf32, #tpu.memory_space<vmem>>, vector<1x8x128xf32>,
    return
  }
  func.func @transform_0(%arg0: i32) -> (i32, i32) {
    %c0_i32 = arith.constant 0 : i32
    %c0_i32_0 = arith.constant 0 : i32
    return %arg0, %c0_i32 : i32, i32
  }
  func.func @transform_1(%arg0: i32) -> (i32, i32) {
    %c0_i32 = arith.constant 0 : i32
    %c0_i32_0 = arith.constant 0 : i32
    return %arg0, %c0_i32 : i32, i32
  }
  func.func @transform_2(%arg0: i32) -> (i32, i32, i32) {
    %c0_i32 = arith.constant 0 : i32
    %c0_i32_0 = arith.constant 0 : i32
    %c0_i32_1 = arith.constant 0 : i32
    return %arg0, %c0_i32, %c0_i32_0 : i32, i32, i32
  }
}

</mosaic_0001>

<llo_original>
// kernel: tpu_custom_call.1
$region0: #{tpu_custom_call.1}
  #allocation0 [shape = 'u32[]', space=smem, size = 0x4, offset = 0x4, fixed_abs, tag = 'smem constant byte address 0x4 - core index']
  #allocation1 [shape = 'u32[144,128]{1,0:T(1,128)}', space=vmem, size = 0x12000, scoped, tag = 'internal scratch']
  %s0 = inlined_call_operand.vmem [shape: f32[8,32], index: 0, kind: input, shape index: {}]
  %s1 = inlined_call_operand.vmem [shape: s32[8,1], index: 1, kind: input, shape index: {}]
  %s2 = inlined_call_operand.hbm [shape: f32[1,8,128], index: 2, kind: output, shape index: {}]
  %s3 = sld [smem:[#allocation0]]
  $region18: #{tpu_custom_call.1} parent=0
    _
  %s5 = ssub.s32 1, %s3
  %s6 = scalar_select 0, %s5, %s3
  $region1: #{tpu_custom_call.1} parent=0
    #allocation2 [shape = 'u8[4096]{0}', space=vmem, size = 0x1000, scoped, tag = 'output window, operand 0, single buffered']
    #allocation3 [shape = 's32[1]{0}', space=sflag, size = 0x4, scoped, tag = 'scoped memory for tpu_custom_call.1']
    %7 = vsyncpa [#allocation3], 0
    // Predicated region
    $region2: #{tpu_custom_call.1} parent=1 // pred_check
      _
    $region3: #{tpu_custom_call.1} parent=1 // pred_check_branch
      %9 = sbr.rel (0) target = $region5
    $region4: #{tpu_custom_call.1} parent=1 // pred_region
      _
    $region5: #{tpu_custom_call.1} parent=1 // pred_fallthru
      _
    // Predicated region
    $region6: #{tpu_custom_call.1} parent=1 // pred_check
      _
    $region7: #{tpu_custom_call.1} parent=1 // pred_check_branch
      %11 = sbr.rel (0) target = $region9
    $region8: #{tpu_custom_call.1} parent=1 // pred_region
      _
    $region9: #{tpu_custom_call.1} parent=1 // pred_fallthru
      _
    %v12 = vld [vmem:[%s0] sm:$0xff]
    %v13 = vld [vmem:[%s1] sm:$0xff]
    %vm14 = vcmask 261120
    %v15 = vsel %vm14, %v12, -inf
    %16 = vmax.xlane.f32.xlu0 %v15
    %v17 = vpop.xlane.xlu0 %16
    %v18 = vsub.f32 %v12, %v17
    %v19 = vmul.f32 %v18, 1.442695
    %v20 = vpow.pop %v19
    %v21 = vsel %vm14, %v20, 0.0
    %22 = vadd.xlane.f32.xlu0 %v21
    %v23 = vpop.xlane.xlu0 %22
    %v24 = vlaneseq
    %v25 = vand.u32 %v24, 127
    %26 = vset.pattern.permute.xlu0 0
    %27 = vperm.xlu0 %26, %v13
    %v28 = vpop.permute.xlu0 %27
    %vm29 = vcmp.eq.s32.totalorder %v25, %v28
    %v30 = vsel %vm29, %v12, 0.0
    %v31 = vsel %vm14, %v30, 0.0
    %32 = vadd.xlane.f32.xlu0 %v31
    %v33 = vpop.xlane.xlu0 %32
    %v34 = vlog2.pop %v23
    %v35 = vmul.f32 %v34, 0.6931472
    %v36 = vadd.f32 %v35, %v17
    %v37 = vsub.f32 %v36, %v33
    %v38 = vrot.slane %v37, 4
    %v39 = vadd.f32 %v37, %v38
    %v40 = vrot.slane %v39, 2
    %v41 = vadd.f32 %v39, %v40
    %v42 = vrot.slane %v41, 1
    %v43 = vadd.f32 %v41, %v42
    %44 = vst [vmem:[#allocation2] sm:$0xff] %v43
    // Predicated region
    $region10: #{tpu_custom_call.1} parent=1 // pred_check
      _
    $region11: #{tpu_custom_call.1} parent=1 // pred_check_branch
      %46 = sbr.rel (0) target = $region13
    $region12: #{tpu_custom_call.1} parent=1 // pred_region
      %s48 = ssub.s32 128, 128
      %49 = vsyncadd [#allocation3], %s48
      %s51 = sshll.u32 [#allocation2], 4
      %s52 = int_to_ptr.vmem [resolvable:$true] %s51
      %54 = dma.vmem_to_hbm [thread:$0]  %s52, 128, %s2, [#allocation3]
    $region13: #{tpu_custom_call.1} parent=1 // pred_fallthru
      _
    // Predicated region
    $region14: #{tpu_custom_call.1} parent=1 // pred_check
      _
    $region15: #{tpu_custom_call.1} parent=1 // pred_check_branch
      %56 = sbr.rel (0) target = $region17
    $region16: #{tpu_custom_call.1} parent=1 // pred_region
      %57 = dma.done [#allocation3], 128
    $region17: #{tpu_custom_call.1} parent=1 // pred_fallthru
      _
    %58 = vsyncpa [#allocation3], 1

</llo_original>
